<compile_context>
chip_gen: v6e
topology: v6e:2x2x1
jax: 0.10.0
libtpu: 0.0.40
codegen_flags: <defaults>
</compile_context>

<pallas_src>
import jax
import jax.numpy as jnp
from jax.experimental import pallas as pl
from jax.experimental.pallas import tpu as pltpu


def ieblock_kernel(x_ref, w1_ref, b1_ref, w2bd_ref, b2_ref, w3_ref, b3_ref, o_ref):
    # x_ref block: (H, C) -- C = TB*W folded batch columns, batch b owns
    # lanes [b*W, (b+1)*W).
    x = x_ref[...]                                                   # (H, C)

    # mlp1 (transposed form): Y1 = w1 @ x + b1  -> (Fp, C)
    y1 = jnp.dot(w1_ref[...], x, preferred_element_type=jnp.float32) + b1_ref[...]

    # mlp2 per batch block of W lanes via a block-diagonal copy of w2^T:
    # Y2 = Y1 @ blockdiag(w2^T) + tile(b2)  -> (Fp, C)
    y2 = jnp.dot(y1, w2bd_ref[...], preferred_element_type=jnp.float32) + b2_ref[...]

    # mlp3 (transposed form): OUT = w3 @ Y2 + b3  -> (F, C)
    out = jnp.dot(w3_ref[...], y2, preferred_element_type=jnp.float32) + b3_ref[...]

    # Output already in (F, lane-dense) layout -- no transpose, unmasked store.
    o_ref[...] = out.astype(o_ref.dtype)


def _choose_tb(B, W):
    """Batch elements folded per grid step.

    Prefer the smallest divisor of B whose lane chunk TB*W is a multiple of
    128 (lane-dense stores, maximal grid length for v7x megacore).  Fall back
    to the whole batch in a single step (block == full array, always legal).
    """
    for tb in range(1, B + 1):
        c = tb * W
        if B % tb == 0 and c % 128 == 0 and c <= 1024:
            return tb
    # TODO(synk): for very large B with lane widths that never hit a 128
    # multiple, pad the folded lane dim instead of taking the whole batch.
    return B


def ieblock_forward(x, w1, b1, w2, b2, w3, b3):
    B, H, W = x.shape
    F_p = w1.shape[0]
    F = w3.shape[0]

    TB = _choose_tb(B, W)
    C = TB * W                       # lanes per grid step
    N = B * W                        # total folded lanes
    grid = N // C

    # --- layout plumbing / parameter prep in XLA (one-time, grid-invariant) ---
    # Fold batch into the lane dimension: x2[h, b*W + w] = x[b, h, w].
    x2 = jnp.transpose(x, (1, 0, 2)).reshape(H, N)

    # Block-diagonal w2^T so mlp2 is one lane-dense matmul per chunk.
    w2bd = jnp.kron(jnp.eye(TB, dtype=w2.dtype), w2.T)      # (C, C)
    b1c = b1.reshape(F_p, 1)                                 # broadcast over lanes
    b2r = jnp.tile(b2, TB).reshape(1, C)                     # broadcast over sublanes
    b3c = b3.reshape(F, 1)                                   # broadcast over lanes

    out2 = pl.pallas_call(
        ieblock_kernel,
        out_shape=jax.ShapeDtypeStruct((F, N), x.dtype),
        grid=(grid,),
        in_specs=[
            pl.BlockSpec((H, C), lambda j: (0, j)),      # x chunk
            pl.BlockSpec((F_p, H), lambda j: (0, 0)),    # w1
            pl.BlockSpec((F_p, 1), lambda j: (0, 0)),    # b1
            pl.BlockSpec((C, C), lambda j: (0, 0)),      # block-diag w2^T
            pl.BlockSpec((1, C), lambda j: (0, 0)),      # tiled b2
            pl.BlockSpec((F, F_p), lambda j: (0, 0)),    # w3
            pl.BlockSpec((F, 1), lambda j: (0, 0)),      # b3
        ],
        out_specs=pl.BlockSpec((F, C), lambda j: (0, j)),
        compiler_params=pltpu.CompilerParams(
            dimension_semantics=("parallel",),
        ),
    )(x2, w1, b1c, w2bd, b2r, w3, b3c)

    # Layout plumbing back: (F, B*W) -> (B, F, W).
    return jnp.transpose(out2.reshape(F, B, W), (1, 0, 2))


def ieblock_ref(x, w1, b1, w2, b2, w3, b3):
    """Pure-JAX reference mirroring the PyTorch forward exactly."""
    b, h, w = x.shape
    y = jnp.swapaxes(x, -2, -1).reshape(b * w, h)
    y = y @ w1.T + b1                       # mlp1
    y = y.reshape(b, w, -1)
    y = jnp.swapaxes(y, -2, -1)
    y = y @ w2.T + b2                       # mlp2
    y = jnp.swapaxes(y, -2, -1)
    y = y @ w3.T + b3                       # mlp3
    return jnp.swapaxes(y, -2, -1)


if __name__ == "__main__":
    # Module hyperparams (small, consistent with IEBlock(H, W, F_p, F))
    B, H, W, F_p, F = 2, 16, 8, 32, 16

    key = jax.random.PRNGKey(0)
    kx, k1, k2, k3, k4, k5, k6 = jax.random.split(key, 7)

    x = jax.random.normal(kx, (B, H, W), dtype=jnp.float32)

    # Deterministic synthetic parameters (nn.Linear weight shapes: (out, in))
    w1 = jax.random.normal(k1, (F_p, H), dtype=jnp.float32) * 0.1
    b1 = jax.random.normal(k2, (F_p,), dtype=jnp.float32) * 0.1
    w2 = jax.random.normal(k3, (W, W), dtype=jnp.float32) * 0.1
    b2 = jax.random.normal(k4, (W,), dtype=jnp.float32) * 0.1
    w3 = jax.random.normal(k5, (F, F_p), dtype=jnp.float32) * 0.1
    b3 = jax.random.normal(k6, (F,), dtype=jnp.float32) * 0.1

    out = ieblock_forward(x, w1, b1, w2, b2, w3, b3)
    out = jax.block_until_ready(out)

    ref = ieblock_ref(x, w1, b1, w2, b2, w3, b3)
    assert out.shape == (B, F, W), out.shape
    assert jnp.allclose(out, ref, atol=1e-5, rtol=1e-5), "mismatch vs reference"

    print("KERNEL_OK")
</pallas_src>

<mosaic_0001>
module attributes {stable_mosaic.version = 11 : i64} {
  func.func @ieblock_kernel(%arg0: i32, %arg1: memref<16x16xf32, #tpu.memory_space<vmem>>, %arg2: memref<32x16xf32, #tpu.memory_space<vmem>>, %arg3: memref<32x1xf32, #tpu.memory_space<vmem>>, %arg4: memref<16x16xf32, #tpu.memory_space<vmem>>, %arg5: memref<1x16xf32, #tpu.memory_space<vmem>>, %arg6: memref<16x32xf32, #tpu.memory_space<vmem>>, %arg7: memref<16x1xf32, #tpu.memory_space<vmem>>, %arg8: memref<16x16xf32, #tpu.memory_space<vmem>>) attributes {dimension_semantics = [#tpu.dimension_semantics<parallel>], iteration_bounds = array<i64: 1>, scalar_prefetch = 0 : i64, scratch_operands = 0 : i64, tpu.core_type = #tpu.core_type<tc>, window_params = [{transform_indices = @transform_0, window_bounds = array<i64: 16, 16>}, {pipeline_mode = #tpu.pipeline_mode<synchronous>, transform_indices = @transform_1, window_bounds = array<i64: 32, 16>}, {pipeline_mode = #tpu.pipeline_mode<synchronous>, transform_indices = @transform_2, window_bounds = array<i64: 32, 1>}, {pipeline_mode = #tpu.pipeline_mode<synchronous>, transform_indices = @transform_3, window_bounds = array<i64: 16, 16>}, {pipeline_mode = #tpu.pipeline_mode<synchronous>, transform_indices = @transform_4, window_bounds = array<i64: 1, 16>}, {pipeline_mode = #tpu.pipeline_mode<synchronous>, transform_indices = @transform_5, window_bounds = array<i64: 16, 32>}, {pipeline_mode = #tpu.pipeline_mode<synchronous>, transform_indices = @transform_6, window_bounds = array<i64: 16, 1>}, {transform_indices = @transform_7, window_bounds = array<i64: 16, 16>}]} {
    %c0 = arith.constant 0 : index
    %c0_0 = arith.constant 0 : index
    %0 = vector.load %arg1[%c0, %c0_0] : memref<16x16xf32, #tpu.memory_space<vmem>>, vector<16x16xf32>
    %c0_1 = arith.constant 0 : index
    %c0_2 = arith.constant 0 : index
    %1 = vector.load %arg2[%c0_1, %c0_2] : memref<32x16xf32, #tpu.memory_space<vmem>>, vector<32x16xf32>
    %cst = arith.constant dense<0.000000e+00> : vector<32x16xf32>
    %2 = tpu.matmul %1, %0, %cst {dimension_numbers = #tpu.dot_dimension_numbers<[1], [0], [0], [1], [0, 0, 1, 1], [], []>} : vector<32x16xf32>, vector<16x16xf32>, vector<32x16xf32> -> vector<32x16xf32>
    %c0_3 = arith.constant 0 : index
    %c0_4 = arith.constant 0 : index
    %3 = vector.load %arg3[%c0_3, %c0_4] : memref<32x1xf32, #tpu.memory_space<vmem>>, vector<32x1xf32>
    %4 = vector.broadcast %3 : vector<32x1xf32> to vector<32x16xf32>
    %5 = arith.addf %2, %4 : vector<32x16xf32>
    %c0_5 = arith.constant 0 : index
    %c0_6 = arith.constant 0 : index
    %6 = vector.load %arg4[%c0_5, %c0_6] : memref<16x16xf32, #tpu.memory_space<vmem>>, vector<16x16xf32>
    %cst_7 = arith.constant dense<0.000000e+00> : vector<32x16xf32>
    %7 = tpu.matmul %5, %6, %cst_7 {dimension_numbers = #tpu.dot_dimension_numbers<[1], [0], [0], [1], [0, 0, 1, 1], [], []>} : vector<32x16xf32>, vector<16x16xf32>, vector<32x16xf32> -> vector<32x16xf32>
    %c0_8 = arith.constant 0 : index
    %c0_9 = arith.constant 0 : index
    %8 = vector.load %arg5[%c0_8, %c0_9] : memref<1x16xf32, #tpu.memory_space<vmem>>, vector<1x16xf32>
    %9 = vector.broadcast %8 : vector<1x16xf32> to vector<32x16xf32>
    %10 = arith.addf %7, %9 : vector<32x16xf32>
    %c0_10 = arith.constant 0 : index
    %c0_11 = arith.constant 0 : index
    %11 = vector.load %arg6[%c0_10, %c0_11] : memref<16x32xf32, #tpu.memory_space<vmem>>, vector<16x32xf32>
    %cst_12 = arith.constant dense<0.000000e+00> : vector<16x16xf32>
    %12 = tpu.matmul %11, %10, %cst_12 {dimension_numbers = #tpu.dot_dimension_numbers<[1], [0], [0], [1], [0, 0, 1, 1], [], []>} : vector<16x32xf32>, vector<32x16xf32>, vector<16x16xf32> -> vector<16x16xf32>
    %c0_13 = arith.constant 0 : index
    %c0_14 = arith.constant 0 : index
    %13 = vector.load %arg7[%c0_13, %c0_14] : memref<16x1xf32, #tpu.memory_space<vmem>>, vector<16x1xf32>
    %14 = vector.broadcast %13 : vector<16x1xf32> to vector<16x16xf32>
    %15 = arith.addf %12, %14 : vector<16x16xf32>
    %c0_15 = arith.constant 0 : index
    %c0_16 = arith.constant 0 : index
    %16 = vector.load %arg8[%c0_15, %c0_16] : memref<16x16xf32, #tpu.memory_space<vmem>>, vector<16x16xf32>
    tpu.vector_store %arg8[%c0_15, %c0_16], %15 {strides = array<i32>} : memref<16x16xf32, #tpu.memory_space<vmem>>, vector<16x16xf32>,
    return
  }
  func.func @transform_0(%arg0: i32) -> (i32, i32) {
    %c0_i32 = arith.constant 0 : i32
    %c0_i32_0 = arith.constant 0 : i32
    return %c0_i32, %arg0 : i32, i32
  }
  func.func @transform_1(%arg0: i32) -> (i32, i32) {
    %c0_i32 = arith.constant 0 : i32
    %c0_i32_0 = arith.constant 0 : i32
    %c0_i32_1 = arith.constant 0 : i32
    return %c0_i32, %c0_i32_0 : i32, i32
  }
  func.func @transform_2(%arg0: i32) -> (i32, i32) {
    %c0_i32 = arith.constant 0 : i32
    %c0_i32_0 = arith.constant 0 : i32
    %c0_i32_1 = arith.constant 0 : i32
    return %c0_i32, %c0_i32_0 : i32, i32
  }
  func.func @transform_3(%arg0: i32) -> (i32, i32) {
    %c0_i32 = arith.constant 0 : i32
    %c0_i32_0 = arith.constant 0 : i32
    %c0_i32_1 = arith.constant 0 : i32
    return %c0_i32, %c0_i32_0 : i32, i32
  }
  func.func @transform_4(%arg0: i32) -> (i32, i32) {
    %c0_i32 = arith.constant 0 : i32
    %c0_i32_0 = arith.constant 0 : i32
    %c0_i32_1 = arith.constant 0 : i32
    return %c0_i32, %c0_i32_0 : i32, i32
  }
  func.func @transform_5(%arg0: i32) -> (i32, i32) {
    %c0_i32 = arith.constant 0 : i32
    %c0_i32_0 = arith.constant 0 : i32
    %c0_i32_1 = arith.constant 0 : i32
    return %c0_i32, %c0_i32_0 : i32, i32
  }
  func.func @transform_6(%arg0: i32) -> (i32, i32) {
    %c0_i32 = arith.constant 0 : i32
    %c0_i32_0 = arith.constant 0 : i32
    %c0_i32_1 = arith.constant 0 : i32
    return %c0_i32, %c0_i32_0 : i32, i32
  }
  func.func @transform_7(%arg0: i32) -> (i32, i32) {
    %c0_i32 = arith.constant 0 : i32
    %c0_i32_0 = arith.constant 0 : i32
    return %c0_i32, %arg0 : i32, i32
  }
}

</mosaic_0001>

<llo_original>
// kernel: tpu_custom_call.1
$region0: #{tpu_custom_call.1}
  #allocation0 [shape = 'u32[]', space=smem, size = 0x4, offset = 0x4, fixed_abs, tag = 'smem constant byte address 0x4 - core index']
  #allocation1 [shape = 'u32[144,128]{1,0:T(1,128)}', space=vmem, size = 0x12000, scoped, tag = 'internal scratch']
  %s0 = inlined_call_operand.vmem [shape: f32[16,16], index: 0, kind: input, shape index: {}]
  %s1 = inlined_call_operand.vmem [shape: f32[32,16], index: 1, kind: input, shape index: {}]
  %s2 = inlined_call_operand.vmem [shape: f32[32,1], index: 2, kind: input, shape index: {}]
  %s3 = inlined_call_operand.vmem [shape: f32[16,16], index: 3, kind: input, shape index: {}]
  %s4 = inlined_call_operand.vmem [shape: f32[1,16], index: 4, kind: input, shape index: {}]
  %s5 = inlined_call_operand.vmem [shape: f32[16,32], index: 5, kind: input, shape index: {}]
  %s6 = inlined_call_operand.vmem [shape: f32[16,1], index: 6, kind: input, shape index: {}]
  %s7 = inlined_call_operand.hbm [shape: f32[16,16], index: 7, kind: output, shape index: {}]
  %s8 = sld [smem:[#allocation0]]
  $region38: #{tpu_custom_call.1} parent=0
    _
  %s10 = ssub.s32 1, %s8
  %s11 = scalar_select 0, %s10, %s8
  $region1: #{tpu_custom_call.1} parent=0
    #allocation2 [shape = 'u8[8192]{0}', space=vmem, size = 0x2000, scoped, tag = 'output window, operand 0, single buffered']
    #allocation3 [shape = 's32[1]{0}', space=sflag, size = 0x4, scoped, tag = 'scoped memory for tpu_custom_call.1']
    %12 = vsyncpa [#allocation3], 0
    // Predicated region
    $region2: #{tpu_custom_call.1} parent=1 // pred_check
      _
    $region3: #{tpu_custom_call.1} parent=1 // pred_check_branch
      %14 = sbr.rel (0) target = $region5
    $region4: #{tpu_custom_call.1} parent=1 // pred_region
      _
    $region5: #{tpu_custom_call.1} parent=1 // pred_fallthru
      _
    // Predicated region
    $region6: #{tpu_custom_call.1} parent=1 // pred_check
      _
    $region7: #{tpu_custom_call.1} parent=1 // pred_check_branch
      %16 = sbr.rel (0) target = $region9
    $region8: #{tpu_custom_call.1} parent=1 // pred_region
      _
    $region9: #{tpu_custom_call.1} parent=1 // pred_fallthru
      _
    // Predicated region
    $region10: #{tpu_custom_call.1} parent=1 // pred_check
      _
    $region11: #{tpu_custom_call.1} parent=1 // pred_check_branch
      %18 = sbr.rel (0) target = $region13
    $region12: #{tpu_custom_call.1} parent=1 // pred_region
      _
    $region13: #{tpu_custom_call.1} parent=1 // pred_fallthru
      _
    // Predicated region
    $region14: #{tpu_custom_call.1} parent=1 // pred_check
      _
    $region15: #{tpu_custom_call.1} parent=1 // pred_check_branch
      %20 = sbr.rel (0) target = $region17
    $region16: #{tpu_custom_call.1} parent=1 // pred_region
      _
    $region17: #{tpu_custom_call.1} parent=1 // pred_fallthru
      _
    // Predicated region
    $region18: #{tpu_custom_call.1} parent=1 // pred_check
      _
    $region19: #{tpu_custom_call.1} parent=1 // pred_check_branch
      %22 = sbr.rel (0) target = $region21
    $region20: #{tpu_custom_call.1} parent=1 // pred_region
      _
    $region21: #{tpu_custom_call.1} parent=1 // pred_fallthru
      _
    // Predicated region
    $region22: #{tpu_custom_call.1} parent=1 // pred_check
      _
    $region23: #{tpu_custom_call.1} parent=1 // pred_check_branch
      %24 = sbr.rel (0) target = $region25
    $region24: #{tpu_custom_call.1} parent=1 // pred_region
      _
    $region25: #{tpu_custom_call.1} parent=1 // pred_fallthru
      _
    // Predicated region
    $region26: #{tpu_custom_call.1} parent=1 // pred_check
      _
    $region27: #{tpu_custom_call.1} parent=1 // pred_check_branch
      %26 = sbr.rel (0) target = $region29
    $region28: #{tpu_custom_call.1} parent=1 // pred_region
      _
    $region29: #{tpu_custom_call.1} parent=1 // pred_fallthru
      _
    %v27 = vld [vmem:[%s0] sm:$0xff]
    %v28 = vld [vmem:[%s0 + $0x8] sm:$0xff]
    %v29 = vld [vmem:[%s1] sm:$0xff]
    %v30 = vld [vmem:[%s1 + $0x8] sm:$0xff]
    %v31 = vld [vmem:[%s1 + $0x10] sm:$0xff]
    %v32 = vld [vmem:[%s1 + $0x18] sm:$0xff]
    %v33 = vld [vmem:[%s2] sm:$0xff]
    %v34 = vld [vmem:[%s2 + $0x8] sm:$0xff]
    %v35 = vld [vmem:[%s2 + $0x10] sm:$0xff]
    %v36 = vld [vmem:[%s2 + $0x18] sm:$0xff]
    %38 = vset.pattern.permute.xlu0 0
    %39 = vperm.xlu0 %38, %v33
    %v40 = vpop.permute.xlu0 %39
    %43 = vset.pattern.permute.xlu0 0
    %44 = vperm.xlu0 %43, %v34
    %v45 = vpop.permute.xlu0 %44
    %48 = vset.pattern.permute.xlu0 0
    %49 = vperm.xlu0 %48, %v35
    %v50 = vpop.permute.xlu0 %49
    %53 = vset.pattern.permute.xlu0 0
    %54 = vperm.xlu0 %53, %v36
    %v55 = vpop.permute.xlu0 %54
    %vm57 = vcmask 130048
    %v59 = vsel %vm57, %v29, 0
    %v62 = vsel %vm57, %v30, 0
    %v65 = vsel %vm57, %v31, 0
    %v68 = vsel %vm57, %v32, 0
    %70 = vmatprep.subr.mxu0 0.0
    %71 = vmatpush1.msra.mxu0 0.0
    %72 = vmatprep.subr.mxu0 0.0
    %73 = vmatpush1.msra.mxu0 0.0
    %74 = vmatprep.subr.mxu0 0.0
    %75 = vmatpush1.msra.mxu0 0.0
    %76 = vmatprep.subr.mxu0 0.0
    %77 = vmatpush1.msra.mxu0 0.0
    %78 = vmatprep.subr.mxu0 0.0
    %79 = vmatpush1.msra.mxu0 0.0
    %80 = vmatprep.subr.mxu0 0.0
    %81 = vmatpush1.msra.mxu0 0.0
    %82 = vmatprep.subr.mxu0 0.0
    %83 = vmatpush1.msra.mxu0 0.0
    %84 = vmatprep.subr.mxu0 0.0
    %85 = vmatpush1.msra.mxu0 0.0
    %86 = vmatprep.subr.mxu0 0.0
    %87 = vmatpush1.msra.mxu0 0.0
    %88 = vmatprep.subr.mxu0 0.0
    %89 = vmatpush1.msra.mxu0 0.0
    %90 = vmatprep.subr.mxu0 0.0
    %91 = vmatpush1.msra.mxu0 0.0
    %92 = vmatprep.subr.mxu0 0.0
    %93 = vmatpush1.msra.mxu0 0.0
    %94 = vmatprep.subr.mxu0 0.0
    %95 = vmatpush1.msra.mxu0 0.0
    %96 = vmatprep.subr.mxu0 0.0
    %97 = vmatpush1.msra.mxu0 0.0
    %98 = vmatprep.subr.mxu0 0.0
    %99 = vmatpush1.msra.mxu0 %v28
    %100 = vmatprep.subr.mxu0 0.0
    %101 = vmatpush1.msra.mxu0 %v27
    %102 = vmatprep.subr.mxu0 0.0
    %103 = vmatpush2.msra.mxu0 0.0
    %104 = vmatprep.subr.mxu0 0.0
    %105 = vmatpush2.msra.mxu0 0.0
    %106 = vmatprep.subr.mxu0 0.0
    %107 = vmatpush2.msra.mxu0 0.0
    %108 = vmatprep.subr.mxu0 0.0
    %109 = vmatpush2.msra.mxu0 0.0
    %110 = vmatprep.subr.mxu0 0.0
    %111 = vmatpush2.msra.mxu0 0.0
    %112 = vmatprep.subr.mxu0 0.0
    %113 = vmatpush2.msra.mxu0 0.0
    %114 = vmatprep.subr.mxu0 0.0
    %115 = vmatpush2.msra.mxu0 0.0
    %116 = vmatprep.subr.mxu0 0.0
    %117 = vmatpush2.msra.mxu0 0.0
    %118 = vmatprep.subr.mxu0 0.0
    %119 = vmatpush2.msra.mxu0 0.0
    %120 = vmatprep.subr.mxu0 0.0
    %121 = vmatpush2.msra.mxu0 0.0
    %122 = vmatprep.subr.mxu0 0.0
    %123 = vmatpush2.msra.mxu0 0.0
    %124 = vmatprep.subr.mxu0 0.0
    %125 = vmatpush2.msra.mxu0 0.0
    %126 = vmatprep.subr.mxu0 0.0
    %127 = vmatpush2.msra.mxu0 0.0
    %128 = vmatprep.subr.mxu0 0.0
    %129 = vmatpush2.msra.mxu0 0.0
    %130 = vmatprep.subr.mxu0 0.0
    %131 = vmatpush2.msra.mxu0 0.0
    %132 = vmatprep.subr.mxu0 0.0
    %133 = vmatpush2.msra.mxu0 0.0
    %134 = vmatprep.mubr.f32.mxu0 0.0
    %135 = vmatmul.mubr.f32.gmra.mxu0 %v59
    %v136 = vpop.f32.mrf.mxu0
    %v137 = vadd.f32 %v40, %v136
    %v138 = vpop.f32.mrf.mxu0
    %139 = vmatprep.mubr.f32.mxu0 0.0
    %140 = vmatmul.mubr.f32.gmra.mxu0 %v62
    %v141 = vpop.f32.mrf.mxu0
    %v142 = vadd.f32 %v45, %v141
    %v143 = vpop.f32.mrf.mxu0
    %144 = vmatprep.mubr.f32.mxu0 0.0
    %145 = vmatmul.mubr.f32.gmra.mxu0 %v65
    %v146 = vpop.f32.mrf.mxu0
    %v147 = vadd.f32 %v50, %v146
    %v148 = vpop.f32.mrf.mxu0
    %149 = vmatprep.mubr.f32.mxu0 0.0
    %150 = vmatmul.mubr.f32.gmra.mxu0 %v68
    %v151 = vpop.f32.mrf.mxu0
    %v152 = vadd.f32 %v55, %v151
    %v153 = vpop.f32.mrf.mxu0
    %154 = vdwg.mxu0
    %v155 = vld [vmem:[%s3] sm:$0xff]
    %v156 = vld [vmem:[%s3 + $0x8] sm:$0xff]
    %v157 = vld [vmem:[%s4] sm:$0x1]
    %v159 = vlaneseq
    %v160 = vshrl.u32 %v159, 7
    %v161 = vsub.s32 0, %v160
    %v162 = vrot.slane %v157, %v161
    %v165 = vsel %vm57, %v137, 0
    %v168 = vsel %vm57, %v142, 0
    %v171 = vsel %vm57, %v147, 0
    %v174 = vsel %vm57, %v152, 0
    %176 = vmatprep.subr.mxu0 0.0
    %177 = vmatpush1.msra.mxu0 0.0
    %178 = vmatprep.subr.mxu0 0.0
    %179 = vmatpush1.msra.mxu0 0.0
    %180 = vmatprep.subr.mxu0 0.0
    %181 = vmatpush1.msra.mxu0 0.0
    %182 = vmatprep.subr.mxu0 0.0
    %183 = vmatpush1.msra.mxu0 0.0
    %184 = vmatprep.subr.mxu0 0.0
    %185 = vmatpush1.msra.mxu0 0.0
    %186 = vmatprep.subr.mxu0 0.0
    %187 = vmatpush1.msra.mxu0 0.0
    %188 = vmatprep.subr.mxu0 0.0
    %189 = vmatpush1.msra.mxu0 0.0
    %190 = vmatprep.subr.mxu0 0.0
    %191 = vmatpush1.msra.mxu0 0.0
    %192 = vmatprep.subr.mxu0 0.0
    %193 = vmatpush1.msra.mxu0 0.0
    %194 = vmatprep.subr.mxu0 0.0
    %195 = vmatpush1.msra.mxu0 0.0
    %196 = vmatprep.subr.mxu0 0.0
    %197 = vmatpush1.msra.mxu0 0.0
    %198 = vmatprep.subr.mxu0 0.0
    %199 = vmatpush1.msra.mxu0 0.0
    %200 = vmatprep.subr.mxu0 0.0
    %201 = vmatpush1.msra.mxu0 0.0
    %202 = vmatprep.subr.mxu0 0.0
    %203 = vmatpush1.msra.mxu0 0.0
    %204 = vmatprep.subr.mxu0 0.0
    %205 = vmatpush1.msra.mxu0 %v156
    %206 = vmatprep.subr.mxu0 0.0
    %207 = vmatpush1.msra.mxu0 %v155
    %208 = vmatprep.subr.mxu0 0.0
    %209 = vmatpush2.msra.mxu0 0.0
    %210 = vmatprep.subr.mxu0 0.0
    %211 = vmatpush2.msra.mxu0 0.0
    %212 = vmatprep.subr.mxu0 0.0
    %213 = vmatpush2.msra.mxu0 0.0
    %214 = vmatprep.subr.mxu0 0.0
    %215 = vmatpush2.msra.mxu0 0.0
    %216 = vmatprep.subr.mxu0 0.0
    %217 = vmatpush2.msra.mxu0 0.0
    %218 = vmatprep.subr.mxu0 0.0
    %219 = vmatpush2.msra.mxu0 0.0
    %220 = vmatprep.subr.mxu0 0.0
    %221 = vmatpush2.msra.mxu0 0.0
    %222 = vmatprep.subr.mxu0 0.0
    %223 = vmatpush2.msra.mxu0 0.0
    %224 = vmatprep.subr.mxu0 0.0
    %225 = vmatpush2.msra.mxu0 0.0
    %226 = vmatprep.subr.mxu0 0.0
    %227 = vmatpush2.msra.mxu0 0.0
    %228 = vmatprep.subr.mxu0 0.0
    %229 = vmatpush2.msra.mxu0 0.0
    %230 = vmatprep.subr.mxu0 0.0
    %231 = vmatpush2.msra.mxu0 0.0
    %232 = vmatprep.subr.mxu0 0.0
    %233 = vmatpush2.msra.mxu0 0.0
    %234 = vmatprep.subr.mxu0 0.0
    %235 = vmatpush2.msra.mxu0 0.0
    %236 = vmatprep.subr.mxu0 0.0
    %237 = vmatpush2.msra.mxu0 0.0
    %238 = vmatprep.subr.mxu0 0.0
    %239 = vmatpush2.msra.mxu0 0.0
    %240 = vmatprep.mubr.f32.mxu0 0.0
    %241 = vmatmul.mubr.f32.gmra.mxu0 %v165
    %v242 = vpop.f32.mrf.mxu0
    %v243 = vadd.f32 %v162, %v242
    %v244 = vpop.f32.mrf.mxu0
    %245 = vmatprep.mubr.f32.mxu0 0.0
    %246 = vmatmul.mubr.f32.gmra.mxu0 %v168
    %v247 = vpop.f32.mrf.mxu0
    %v248 = vadd.f32 %v162, %v247
    %v249 = vpop.f32.mrf.mxu0
    %250 = vmatprep.mubr.f32.mxu0 0.0
    %251 = vmatmul.mubr.f32.gmra.mxu0 %v171
    %v252 = vpop.f32.mrf.mxu0
    %v253 = vadd.f32 %v162, %v252
    %v254 = vpop.f32.mrf.mxu0
    %255 = vmatprep.mubr.f32.mxu0 0.0
    %256 = vmatmul.mubr.f32.gmra.mxu0 %v174
    %v257 = vpop.f32.mrf.mxu0
    %v258 = vadd.f32 %v162, %v257
    %v259 = vpop.f32.mrf.mxu0
    %260 = vdwg.mxu0
    %v261 = vld [vmem:[%s5] sm:$0xff]
    %v262 = vld [vmem:[%s5 + $0x8] sm:$0xff]
    %v263 = vld [vmem:[%s6] sm:$0xff]
    %v264 = vld [vmem:[%s6 + $0x8] sm:$0xff]
    %266 = vset.pattern.permute.xlu0 0
    %267 = vperm.xlu0 %266, %v263
    %v268 = vpop.permute.xlu0 %267
    %271 = vset.pattern.permute.xlu0 0
    %272 = vperm.xlu0 %271, %v264
    %v273 = vpop.permute.xlu0 %272
    %vm275 = vcmask 261120
    %v277 = vsel %vm275, %v261, 0
    %v280 = vsel %vm275, %v262, 0
    %282 = vmatprep.subr.mxu0 0.0
    %283 = vmatpush1.msra.mxu0 0.0
    %284 = vmatprep.subr.mxu0 0.0
    %285 = vmatpush1.msra.mxu0 0.0
    %286 = vmatprep.subr.mxu0 0.0
    %287 = vmatpush1.msra.mxu0 0.0
    %288 = vmatprep.subr.mxu0 0.0
    %289 = vmatpush1.msra.mxu0 0.0
    %290 = vmatprep.subr.mxu0 0.0
    %291 = vmatpush1.msra.mxu0 0.0
    %292 = vmatprep.subr.mxu0 0.0
    %293 = vmatpush1.msra.mxu0 0.0
    %294 = vmatprep.subr.mxu0 0.0
    %295 = vmatpush1.msra.mxu0 0.0
    %296 = vmatprep.subr.mxu0 0.0
    %297 = vmatpush1.msra.mxu0 0.0
    %298 = vmatprep.subr.mxu0 0.0
    %299 = vmatpush1.msra.mxu0 0.0
    %300 = vmatprep.subr.mxu0 0.0
    %301 = vmatpush1.msra.mxu0 0.0
    %302 = vmatprep.subr.mxu0 0.0
    %303 = vmatpush1.msra.mxu0 0.0
    %304 = vmatprep.subr.mxu0 0.0
    %305 = vmatpush1.msra.mxu0 0.0
    %306 = vmatprep.subr.mxu0 0.0
    %307 = vmatpush1.msra.mxu0 %v258
    %308 = vmatprep.subr.mxu0 0.0
    %309 = vmatpush1.msra.mxu0 %v253
    %310 = vmatprep.subr.mxu0 0.0
    %311 = vmatpush1.msra.mxu0 %v248
    %312 = vmatprep.subr.mxu0 0.0
    %313 = vmatpush1.msra.mxu0 %v243
    %314 = vmatprep.subr.mxu0 0.0
    %315 = vmatpush2.msra.mxu0 0.0
    %316 = vmatprep.subr.mxu0 0.0
    %317 = vmatpush2.msra.mxu0 0.0
    %318 = vmatprep.subr.mxu0 0.0
    %319 = vmatpush2.msra.mxu0 0.0
    %320 = vmatprep.subr.mxu0 0.0
    %321 = vmatpush2.msra.mxu0 0.0
    %322 = vmatprep.subr.mxu0 0.0
    %323 = vmatpush2.msra.mxu0 0.0
    %324 = vmatprep.subr.mxu0 0.0
    %325 = vmatpush2.msra.mxu0 0.0
    %326 = vmatprep.subr.mxu0 0.0
    %327 = vmatpush2.msra.mxu0 0.0
    %328 = vmatprep.subr.mxu0 0.0
    %329 = vmatpush2.msra.mxu0 0.0
    %330 = vmatprep.subr.mxu0 0.0
    %331 = vmatpush2.msra.mxu0 0.0
    %332 = vmatprep.subr.mxu0 0.0
    %333 = vmatpush2.msra.mxu0 0.0
    %334 = vmatprep.subr.mxu0 0.0
    %335 = vmatpush2.msra.mxu0 0.0
    %336 = vmatprep.subr.mxu0 0.0
    %337 = vmatpush2.msra.mxu0 0.0
    %338 = vmatprep.subr.mxu0 0.0
    %339 = vmatpush2.msra.mxu0 0.0
    %340 = vmatprep.subr.mxu0 0.0
    %341 = vmatpush2.msra.mxu0 0.0
    %342 = vmatprep.subr.mxu0 0.0
    %343 = vmatpush2.msra.mxu0 0.0
    %344 = vmatprep.subr.mxu0 0.0
    %345 = vmatpush2.msra.mxu0 0.0
    %346 = vmatprep.mubr.f32.mxu0 0.0
    %347 = vmatmul.mubr.f32.gmra.mxu0 %v277
    %v348 = vpop.f32.mrf.mxu0
    %v349 = vadd.f32 %v268, %v348
    %v350 = vpop.f32.mrf.mxu0
    %351 = vmatprep.mubr.f32.mxu0 0.0
    %352 = vmatmul.mubr.f32.gmra.mxu0 %v280
    %v353 = vpop.f32.mrf.mxu0
    %v354 = vadd.f32 %v273, %v353
    %v355 = vpop.f32.mrf.mxu0
    %356 = vdwg.mxu0
    %357 = vst.msk [vmem:[#allocation2] sm:$0xff] %vm57, %v349
    %358 = vst.msk [vmem:[#allocation2 + $0x8] sm:$0xff] %vm57, %v354
    // Predicated region
    $region30: #{tpu_custom_call.1} parent=1 // pred_check
      _
    $region31: #{tpu_custom_call.1} parent=1 // pred_check_branch
      %360 = sbr.rel (0) target = $region33
    $region32: #{tpu_custom_call.1} parent=1 // pred_region
      %s362 = ssub.s32 256, 256
      %363 = vsyncadd [#allocation3], %s362
      %s364 = sshll.u32 [#allocation2], 4
      %s365 = int_to_ptr.vmem [resolvable:$true] %s364
      %370 = dma.vmem_to_hbm [thread:$0]  %s365, 256, %s7, [#allocation3], 128, 128, 8
    $region33: #{tpu_custom_call.1} parent=1 // pred_fallthru
      _
    // Predicated region
    $region34: #{tpu_custom_call.1} parent=1 // pred_check
      _
    $region35: #{tpu_custom_call.1} parent=1 // pred_check_branch
      %372 = sbr.rel (0) target = $region37
    $region36: #{tpu_custom_call.1} parent=1 // pred_region
      %373 = dma.done [#allocation3], 256
    $region37: #{tpu_custom_call.1} parent=1 // pred_fallthru
      _
    %374 = vsyncpa [#allocation3], 1

</llo_original>
